<compile_context>
chip_gen: v5e
topology: v5e:2x2
jax: 0.10.0
libtpu: 0.0.40
codegen_flags: <defaults>
</compile_context>

<pallas_src>
import functools

import jax
import jax.numpy as jnp
from jax.experimental import pallas as pl
from jax.experimental.pallas import tpu as pltpu

# ---- constants from loss_function.__init__ / forward ----
LAMBDA1 = 20.0
L2_PARAM = 0.0034
L2_LIM = 0.02
MASK_SIZE = 8 * 224 * 224
L2_FLAG = False
L3_FLAG = False
LAMBDA2 = (0.001 + 0.0005) if L2_FLAG else 0.0
LAMBDA3 = 0.0001 if (L2_FLAG and L3_FLAG) else 0.0

_TINY = 1e-30                      # log(max(m, _TINY)): m==0 -> 0 * finite == 0
_MAX_BLOCK_ELEMS = 1 << 20         # ~4 MiB f32 per input tile (0.5-4 MiB target)


# ====================== kernel A: lane-dense KL-sum reduction =================

def _kl_sum_kernel(x_ref, m_ref, out_ref, acc_ref, *,
                   tr, nsplit, rows_total, needs_mask):
    c = pl.program_id(0)
    j = pl.program_id(1)

    @pl.when(j == 0)
    def _init():
        acc_ref[...] = jnp.zeros_like(acc_ref)

    x = x_ref[...].astype(jnp.float32)
    m = m_ref[...].astype(jnp.float32)
    # pointwise kl_div (log_target=False); target==0 term is exactly 0 and the
    # max() clamp keeps the m==0 branch finite (no -inf/NaN, autodiff-safe).
    kl = m * (jnp.log(jnp.maximum(m, _TINY)) - x)

    if needs_mask:
        blk = j * nsplit + c                 # logical (interleaved) tile index

        @pl.when(blk * tr + tr <= rows_total)          # fully valid tile
        def _full():
            acc_ref[...] += kl

        @pl.when(blk * tr + tr > rows_total)           # partial / phantom tile
        def _partial():
            ridx = blk * tr + jax.lax.broadcasted_iota(jnp.int32, kl.shape, 0)
            acc_ref[...] += jnp.where(ridx < rows_total, kl, 0.0)
    else:
        acc_ref[...] += kl

    @pl.when(j == pl.num_programs(1) - 1)
    def _fin():
        out_ref[...] = jnp.full(out_ref.shape, jnp.sum(acc_ref[...]),
                                dtype=out_ref.dtype)


def _pick_lanes(numel, last_dim):
    for cand in (1024, 512, 256, 128):
        if numel % cand == 0:
            return cand
    return last_dim                          # fallback: keep original last dim


def _pick_tile_rows(rows, lanes):
    """Largest useful row-tile: multiple of 8 (or the full dim), capped so one
    input tile stays <= ~4 MiB f32, and >= 2 tiles whenever possible so the
    v7x megacore split has work for both TensorCores."""
    cap = max(8, _MAX_BLOCK_ELEMS // lanes)
    if rows <= cap:
        if rows < 16:                        # too small to split: one full tile
            return rows
        tr = -(-rows // 2)                   # ~two tiles -> both v7x cores busy
        return max(8, (tr // 8) * 8)
    return max(8, (cap // 8) * 8)


def _kl_sum(x_logit, m_logit):
    numel = x_logit.size
    lanes = _pick_lanes(numel, x_logit.shape[-1])
    rows = numel // lanes
    # No wrapper astype: feed the native dtype (bf16 halves HBM bytes) and cast
    # inside the kernel; reshape of a contiguous array is free.
    x2 = x_logit.reshape(rows, lanes)
    m2 = m_logit.reshape(rows, lanes)

    tr = _pick_tile_rows(rows, lanes)
    tiles_total = pl.cdiv(rows, tr)
    nsplit = 2 if tiles_total >= 2 else 1            # v7x: half the tiles per TC
    tiles_per_core = pl.cdiv(tiles_total, nsplit)
    needs_mask = (rows % tr != 0) or (tiles_total % nsplit != 0)
    last_blk = tiles_total - 1

    def in_map(c, j):
        # Interleaved tile assignment (core c takes tiles c, c+nsplit, ...) for
        # load balance; phantom tiles are clamped here and zero-masked in-kernel.
        return (jnp.minimum(j * nsplit + c, last_blk), 0)

    kern = functools.partial(_kl_sum_kernel, tr=tr, nsplit=nsplit,
                             rows_total=rows, needs_mask=needs_mask)
    partials = pl.pallas_call(
        kern,
        out_shape=jax.ShapeDtypeStruct((nsplit, 8, 128), jnp.float32),
        grid_spec=pltpu.PrefetchScalarGridSpec(
            num_scalar_prefetch=0,
            grid=(nsplit, tiles_per_core),
            in_specs=[pl.BlockSpec((tr, lanes), in_map),
                      pl.BlockSpec((tr, lanes), in_map)],
            out_specs=pl.BlockSpec((1, 8, 128), lambda c, j: (c, 0, 0)),
            scratch_shapes=[pltpu.VMEM((tr, lanes), jnp.float32)],
        ),
        compiler_params=pltpu.CompilerParams(
            dimension_semantics=(pltpu.PARALLEL, pltpu.ARBITRARY),
            vmem_limit_bytes=32 * 1024 * 1024),
    )(x2, m2)
    return jnp.sum(partials[:, 0, 0])


# ============ kernel B (general path): fused mask_label + loss sums ===========
# TODO(synk): tensor_dilate / tensor_erode / kornia median_blur are not defined
# in the source snippet; reimplemented with their standard semantics (zero pad
# for dilation/median, pad=1 for erosion) -- border handling may differ.

def _fused_label_loss_kernel(x_ref, m_ref, mask_ref, out_ref,
                             acc_kl, acc_msq, acc_d2, *,
                             n_images, imgs_per_core, needs_mask):
    c = pl.program_id(0)
    j = pl.program_id(1)

    @pl.when(j == 0)
    def _init():
        acc_kl[...] = jnp.zeros_like(acc_kl)
        acc_msq[...] = jnp.zeros_like(acc_msq)
        acc_d2[...] = jnp.zeros_like(acc_d2)

    def _compute():
        x = x_ref[0].astype(jnp.float32)             # (H, W)
        m = m_ref[0].astype(jnp.float32)
        mk = mask_ref[0].astype(jnp.float32)
        H, W = mk.shape

        rows_i = jax.lax.broadcasted_iota(jnp.int32, (H, W), 0)
        cols_i = jax.lax.broadcasted_iota(jnp.int32, (H, W), 1)

        # Boundary masks hoisted out of the tap loops: one single-compare mask
        # per (axis, offset), shared by the 7-tap dilate/erode and 5-tap box.
        def _ok(idx, d, n):
            return idx < (n - d) if d > 0 else idx >= (-d)
        col_ok = {d: _ok(cols_i, d, W) for d in range(-3, 4) if d != 0}
        row_ok = {d: _ok(rows_i, d, H) for d in range(-3, 4) if d != 0}

        def slide(img, axis, k, pad_val, op, ok):
            n = img.shape[axis]
            out = img
            for d in range(-(k // 2), k // 2 + 1):
                if d == 0:
                    continue
                y = pltpu.roll(img, shift=(-d) % n, axis=axis)   # XLU, off-VPU
                out = op(out, jnp.where(ok[d], y, pad_val))      # 2 VPU ops/tap
            return out

        def morph(img, k, pad_val, op):               # separable k x k pooling
            return slide(slide(img, 1, k, pad_val, op, col_ok),
                         0, k, pad_val, op, row_ok)

        dil = morph(mk, 7, 0.0, jnp.maximum)          # tensor_dilate(mask, 7)
        ero = morph(dil, 7, 1.0, jnp.minimum)         # tensor_erode(., 7)
        # median_blur(., (5,5)) then >0.5 on a binary image == majority vote.
        cnt = slide(slide(ero, 1, 5, 0.0, jnp.add, col_ok),
                    0, 5, 0.0, jnp.add, row_ok)
        label = jnp.where(cnt >= 12.5, 1.0, 0.0)

        kl = m * (jnp.log(jnp.maximum(m, _TINY)) - x)
        diff = mk - label
        # Element-wise VMEM field accumulators (no per-image scalar reduce).
        acc_kl[...] += kl
        acc_msq[...] += mk * mk      # mk*mk == mk for binary masks; kept general
        acc_d2[...] += diff * diff

    if needs_mask:
        pl.when(c * imgs_per_core + j < n_images)(_compute)
    else:
        _compute()

    @pl.when(j == pl.num_programs(1) - 1)
    def _fin():
        out_ref[0:1, 0:1, :] = jnp.full((1, 1, 128), jnp.sum(acc_kl[...]),
                                        dtype=jnp.float32)
        out_ref[0:1, 1:2, :] = jnp.full((1, 1, 128), jnp.sum(acc_msq[...]),
                                        dtype=jnp.float32)
        out_ref[0:1, 2:3, :] = jnp.full((1, 1, 128), jnp.sum(acc_d2[...]),
                                        dtype=jnp.float32)


def _fused_label_loss_sums(x_logit, m_logit, mask):
    B, C, H, W = mask.shape
    n = B * C
    # Native dtype straight into the kernel (cast inside), reshape only.
    x3 = x_logit.reshape(n, H, W)
    m3 = m_logit.reshape(n, H, W)
    k3 = mask.reshape(n, H, W)

    nsplit = 2 if n >= 2 else 1                      # v7x: half the images per TC
    imgs_per_core = pl.cdiv(n, nsplit)
    needs_mask = (n % nsplit) != 0
    last_img = n - 1

    def img_map(c, j):
        return (jnp.minimum(c * imgs_per_core + j, last_img), 0, 0)

    spec = pl.BlockSpec((1, H, W), img_map)
    kern = functools.partial(_fused_label_loss_kernel, n_images=n,
                             imgs_per_core=imgs_per_core, needs_mask=needs_mask)
    partials = pl.pallas_call(
        kern,
        out_shape=jax.ShapeDtypeStruct((nsplit, 3, 128), jnp.float32),
        grid_spec=pltpu.PrefetchScalarGridSpec(
            num_scalar_prefetch=0,
            grid=(nsplit, imgs_per_core),
            in_specs=[spec, spec, spec],
            out_specs=pl.BlockSpec((1, 3, 128), lambda c, j: (c, 0, 0)),
            scratch_shapes=[pltpu.VMEM((H, W), jnp.float32),
                            pltpu.VMEM((H, W), jnp.float32),
                            pltpu.VMEM((H, W), jnp.float32)],
        ),
        compiler_params=pltpu.CompilerParams(
            dimension_semantics=(pltpu.PARALLEL, pltpu.ARBITRARY),
            vmem_limit_bytes=32 * 1024 * 1024),
    )(x3, m3, k3)
    return (jnp.sum(partials[:, 0, 0]),
            jnp.sum(partials[:, 1, 0]),
            jnp.sum(partials[:, 2, 0]))


# ================================== forward ===================================

@functools.partial(jax.jit, static_argnames=("lambda2", "lambda3"))
def loss_function_forward(x_logit, m_logit, mask, *,
                          lambda2=LAMBDA2, lambda3=LAMBDA3):
    numel = x_logit.size
    if lambda2 == 0.0 and lambda3 == 0.0:
        # Static DCE: with both L2/L3 terms multiplied by zero, the morphology /
        # median pipeline contributes nothing -> only the KL reduction runs.
        kl_sum = _kl_sum(x_logit, m_logit)
        return (kl_sum / numel) * LAMBDA1

    kl_sum, mask_sq_sum, diff_sq_sum = _fused_label_loss_sums(
        x_logit, m_logit, mask)
    loss1 = (kl_sum / numel) * LAMBDA1               # F.kl_div, reduction='mean'
    # (mask.norm(2) - c).norm(2) on a scalar == abs(.)
    loss2 = jnp.abs(jnp.sqrt(mask_sq_sum)
                    - L2_PARAM * MASK_SIZE * L2_LIM) * lambda2
    loss3 = jnp.sqrt(diff_sq_sum) * lambda3
    return loss1 + loss2 + loss3


if __name__ == "__main__":
    key = jax.random.PRNGKey(0)
    kx, km, kk = jax.random.split(key, 3)
    B, C, H, W = 2, 1, 32, 32
    # Typical kl_div usage: x_logit = log-probs, m_logit = probs.
    x_logit = jax.nn.log_softmax(
        jax.random.normal(kx, (B, C, H, W), jnp.float32), axis=-1)
    m_logit = jax.nn.softmax(
        jax.random.normal(km, (B, C, H, W), jnp.float32), axis=-1)
    mask = (jax.random.uniform(kk, (B, C, H, W)) > 0.6).astype(jnp.float32)

    # ---- default configuration (module constants: lambda2 = lambda3 = 0) ----
    loss = jax.block_until_ready(loss_function_forward(x_logit, m_logit, mask))
    kl_ref = jnp.where(m_logit > 0, m_logit * (jnp.log(m_logit) - x_logit), 0.0)
    ref = jnp.mean(kl_ref) * LAMBDA1
    assert jnp.allclose(loss, ref, rtol=1e-4, atol=1e-6), (float(loss), float(ref))

    # ---- general configuration (L2/L3 flags on): exercises fused morphology --
    lam2, lam3 = 0.001 + 0.0005, 0.0001
    loss_g = jax.block_until_ready(
        loss_function_forward(x_logit, m_logit, mask,
                              lambda2=lam2, lambda3=lam3))

    def _pool(img, k, pad_val, op):
        r = k // 2
        p = jnp.pad(img, ((0, 0), (0, 0), (r, r), (r, r)),
                    constant_values=pad_val)
        out = None
        for dy in range(k):
            for dx in range(k):
                v = p[:, :, dy:dy + H, dx:dx + W]
                out = v if out is None else op(out, v)
        return out

    def _median5(img):
        p = jnp.pad(img, ((0, 0), (0, 0), (2, 2), (2, 2)))
        wins = [p[:, :, dy:dy + H, dx:dx + W]
                for dy in range(5) for dx in range(5)]
        return jnp.median(jnp.stack(wins, 0), axis=0)

    dil_r = _pool(mask, 7, 0.0, jnp.maximum)
    ero_r = _pool(dil_r, 7, 1.0, jnp.minimum)
    label_r = jnp.where(_median5(ero_r) > 0.5, 1.0, 0.0)
    ref_g = (ref
             + jnp.abs(jnp.sqrt(jnp.sum(mask * mask))
                       - L2_PARAM * MASK_SIZE * L2_LIM) * lam2
             + jnp.sqrt(jnp.sum((mask - label_r) ** 2)) * lam3)
    assert jnp.allclose(loss_g, ref_g, rtol=1e-4, atol=1e-5), (
        float(loss_g), float(ref_g))

    print("KERNEL_OK")
</pallas_src>

<mosaic_0001>
module attributes {stable_mosaic.version = 11 : i64} {
  func.func @_kl_sum_kernel(%arg0: i32, %arg1: i32, %arg2: memref<2x1024xf32, #tpu.memory_space<vmem>>, %arg3: memref<2x1024xf32, #tpu.memory_space<vmem>>, %arg4: memref<1x8x128xf32, #tpu.memory_space<vmem>>, %arg5: memref<2x1024xf32, #tpu.memory_space<vmem>>) attributes {dimension_semantics = [#tpu.dimension_semantics<parallel>, #tpu.dimension_semantics<arbitrary>], iteration_bounds = array<i64: 1, 1>, scalar_prefetch = 0 : i64, scratch_operands = 1 : i64, tpu.core_type = #tpu.core_type<tc>, window_params = [{transform_indices = @transform_0, window_bounds = array<i64: 2, 1024>}, {transform_indices = @transform_1, window_bounds = array<i64: 2, 1024>}, {transform_indices = @transform_2, window_bounds = array<i64: 1, 8, 128>}]} {
    %c0_i32 = arith.constant 0 : i32
    %0 = arith.cmpi eq, %arg1, %c0_i32 : i32
    %1 = arith.extui %0 : i1 to i32
    %c0_i32_0 = arith.constant 0 : i32
    %2 = arith.cmpi ne, %1, %c0_i32_0 : i32
    scf.if %2 {
      %cst_10 = arith.constant 0.000000e+00 : f32
      %16 = vector.broadcast %cst_10 : f32 to vector<2x1024xf32>
      %c0_11 = arith.constant 0 : index
      %c0_12 = arith.constant 0 : index
      %17 = vector.load %arg5[%c0_11, %c0_12] : memref<2x1024xf32, #tpu.memory_space<vmem>>, vector<2x1024xf32>
      tpu.vector_store %arg5[%c0_11, %c0_12], %16 {strides = array<i32>} : memref<2x1024xf32, #tpu.memory_space<vmem>>, vector<2x1024xf32>,
    } else {
    }
    %c0 = arith.constant 0 : index
    %c0_1 = arith.constant 0 : index
    %3 = vector.load %arg2[%c0, %c0_1] : memref<2x1024xf32, #tpu.memory_space<vmem>>, vector<2x1024xf32>
    %c0_2 = arith.constant 0 : index
    %c0_3 = arith.constant 0 : index
    %4 = vector.load %arg3[%c0_2, %c0_3] : memref<2x1024xf32, #tpu.memory_space<vmem>>, vector<2x1024xf32>
    %cst = arith.constant 1.000000e-30 : f32
    %5 = vector.broadcast %cst : f32 to vector<2x1024xf32>
    %6 = arith.maximumf %4, %5 : vector<2x1024xf32>
    %7 = math.log %6 : vector<2x1024xf32>
    %8 = arith.subf %7, %3 : vector<2x1024xf32>
    %9 = arith.mulf %4, %8 : vector<2x1024xf32>
    %c0_4 = arith.constant 0 : index
    %c0_5 = arith.constant 0 : index
    %10 = vector.load %arg5[%c0_4, %c0_5] : memref<2x1024xf32, #tpu.memory_space<vmem>>, vector<2x1024xf32>
    %11 = arith.addf %10, %9 : vector<2x1024xf32>
    %c0_6 = arith.constant 0 : index
    %c0_7 = arith.constant 0 : index
    %12 = vector.load %arg5[%c0_6, %c0_7] : memref<2x1024xf32, #tpu.memory_space<vmem>>, vector<2x1024xf32>
    tpu.vector_store %arg5[%c0_6, %c0_7], %11 {strides = array<i32>} : memref<2x1024xf32, #tpu.memory_space<vmem>>, vector<2x1024xf32>,
    %c0_i32_8 = arith.constant 0 : i32
    %13 = arith.cmpi eq, %arg1, %c0_i32_8 : i32
    %14 = arith.extui %13 : i1 to i32
    %c0_i32_9 = arith.constant 0 : i32
    %15 = arith.cmpi ne, %14, %c0_i32_9 : i32
    scf.if %15 {
      %c0_10 = arith.constant 0 : index
      %c0_11 = arith.constant 0 : index
      %16 = vector.load %arg5[%c0_10, %c0_11] : memref<2x1024xf32, #tpu.memory_space<vmem>>, vector<2x1024xf32>
      %17 = vector.shape_cast %16 : vector<2x1024xf32> to vector<1x2x1024xf32>
      %cst_12 = arith.constant dense<0.000000e+00> : vector<1xf32>
      %18 = vector.multi_reduction <add>, %17, %cst_12 [1, 2] : vector<1x2x1024xf32> to vector<1xf32>
      %19 = vector.shape_cast %18 : vector<1xf32> to vector<1x1x1xf32>
      %20 = vector.extract %19[0, 0, 0] : f32 from vector<1x1x1xf32>
      %21 = vector.broadcast %20 : f32 to vector<1x8x128xf32>
      %c0_13 = arith.constant 0 : index
      %c0_14 = arith.constant 0 : index
      %c0_15 = arith.constant 0 : index
      %22 = vector.load %arg4[%c0_13, %c0_14, %c0_15] : memref<1x8x128xf32, #tpu.memory_space<vmem>>, vector<1x8x128xf32>
      tpu.vector_store %arg4[%c0_13, %c0_14, %c0_15], %21 {strides = array<i32>} : memref<1x8x128xf32, #tpu.memory_space<vmem>>, vector<1x8x128xf32>,
    } else {
    }
    return
  }
  func.func @transform_0(%arg0: i32, %arg1: i32) -> (i32, i32) {
    %c1_i32 = arith.constant 1 : i32
    %0 = arith.muli %arg1, %c1_i32 : i32
    %1 = arith.addi %0, %arg0 : i32
    %c0_i32 = arith.constant 0 : i32
    %2 = arith.minsi %1, %c0_i32 : i32
    %c0_i32_0 = arith.constant 0 : i32
    %c0_i32_1 = arith.constant 0 : i32
    return %2, %c0_i32_0 : i32, i32
  }
  func.func @transform_1(%arg0: i32, %arg1: i32) -> (i32, i32) {
    %c1_i32 = arith.constant 1 : i32
    %0 = arith.muli %arg1, %c1_i32 : i32
    %1 = arith.addi %0, %arg0 : i32
    %c0_i32 = arith.constant 0 : i32
    %2 = arith.minsi %1, %c0_i32 : i32
    %c0_i32_0 = arith.constant 0 : i32
    %c0_i32_1 = arith.constant 0 : i32
    return %2, %c0_i32_0 : i32, i32
  }
  func.func @transform_2(%arg0: i32, %arg1: i32) -> (i32, i32, i32) {
    %c0_i32 = arith.constant 0 : i32
    %c0_i32_0 = arith.constant 0 : i32
    %c0_i32_1 = arith.constant 0 : i32
    return %arg0, %c0_i32, %c0_i32_0 : i32, i32, i32
  }
}

</mosaic_0001>

<llo_original>
// kernel: loss_function_forward.1
$region0: #{loss_function_forward.1}
  #allocation0 [shape = 'u32[]', space=smem, size = 0x4, offset = 0x4, fixed_abs, tag = 'smem constant byte address 0x4 - core index']
  #allocation1 [shape = 'u32[72,128]{1,0:T(1,128)}', space=vmem, size = 0x9000, scoped, tag = 'internal scratch']
  #allocation2 [shape = 'f32[2,1024]{1,0:T(2,128)}', space=vmem, size = 0x2000, scoped, tag = 'scratch operand']
  %s0 = inlined_call_operand.vmem [shape: f32[2,1024], index: 0, kind: input, shape index: {}]
  %s1 = inlined_call_operand.vmem [shape: f32[2,1024], index: 1, kind: input, shape index: {}]
  %s2 = inlined_call_operand.vmem [shape: f32[1,8,128], index: 2, kind: output, shape index: {}]
  %s3 = sld [smem:[#allocation0]]
  $region26: #{loss_function_forward.1} parent=0
    _
  %s5 = ssub.s32 1, %s3
  %s6 = scalar_select 0, %s5, %s3
  // Predicated region
  $region2: #{loss_function_forward.1} parent=0 // pred_check
    _
  $region3: #{loss_function_forward.1} parent=0 // pred_check_branch
    %8 = sbr.rel (0) target = $region5
  $region4: #{loss_function_forward.1} parent=0 // pred_region
    %s9 = sadd.s32 0, 0
    %p10 = scmp.lt.s32.totalorder %s9, 0
    %s11 = scalar_select %p10, %s9, 0
    %p12 = scmp.lt.s32.totalorder %s11, 0
    %s13 = scalar_select %p12, %s11, 0
    %s14 = smul.addr %s13, 8
    %s15 = smul.addr %s14, 2
    %s16 = scalar_lea.vmem %s0, %s15
    %s17 = sadd.s32 0, 0
    %p18 = scmp.lt.s32.totalorder %s17, 0
    %s19 = scalar_select %p18, %s17, 0
  $region5: #{loss_function_forward.1} parent=0 // pred_fallthru
    _
  // Predicated region
  $region6: #{loss_function_forward.1} parent=0 // pred_check
    _
  $region7: #{loss_function_forward.1} parent=0 // pred_check_branch
    %21 = sbr.rel (0) target = $region9
  $region8: #{loss_function_forward.1} parent=0 // pred_region
    %s22 = sadd.s32 0, 0
    %p23 = scmp.lt.s32.totalorder %s22, 0
    %s24 = scalar_select %p23, %s22, 0
    %p25 = scmp.lt.s32.totalorder %s24, 0
    %s26 = scalar_select %p25, %s24, 0
    %s27 = smul.addr %s26, 8
    %s28 = smul.addr %s27, 2
    %s29 = scalar_lea.vmem %s1, %s28
    %s30 = sadd.s32 0, 0
    %p31 = scmp.lt.s32.totalorder %s30, 0
    %s32 = scalar_select %p31, %s30, 0
  $region9: #{loss_function_forward.1} parent=0 // pred_fallthru
    _
  %s33 = sadd.s32 0, 0
  %p34 = scmp.lt.s32.totalorder %s33, 0
  %s35 = scalar_select %p34, %s33, 0
  %p36 = scmp.lt.s32.totalorder %s35, 0
  %s37 = scalar_select %p36, %s35, 0
  %s38 = smul.addr %s37, 8
  %s39 = smul.addr %s38, 2
  %s40 = scalar_lea.vmem %s0, %s39
  %s41 = sadd.s32 0, 0
  %p42 = scmp.lt.s32.totalorder %s41, 0
  %s43 = scalar_select %p42, %s41, 0
  %p44 = scmp.lt.s32.totalorder %s43, 0
  %s45 = scalar_select %p44, %s43, 0
  %s46 = smul.addr %s45, 8
  %s47 = smul.addr %s46, 2
  %s48 = scalar_lea.vmem %s1, %s47
  %s49 = sadd.s32 0, 0
  %p50 = scmp.lt.s32.totalorder %s49, 0
  %s51 = scalar_select %p50, %s49, 0
  %p52 = scmp.lt.s32.totalorder %s51, 0
  %s53 = scalar_select %p52, %s51, 0
  %s54 = smul.addr %s53, 8
  %s55 = smul.addr %s54, 2
  %s56 = scalar_lea.vmem %s0, %s55
  %s57 = sadd.s32 0, 0
  %p58 = scmp.lt.s32.totalorder %s57, 0
  %s59 = scalar_select %p58, %s57, 0
  %s60 = sadd.s32 0, 0
  %p61 = scmp.lt.s32.totalorder %s60, 0
  %s62 = scalar_select %p61, %s60, 0
  %p63 = scmp.lt.s32.totalorder %s62, 0
  %s64 = scalar_select %p63, %s62, 0
  %s65 = smul.addr %s64, 8
  %s66 = smul.addr %s65, 2
  %s67 = scalar_lea.vmem %s1, %s66
  %s68 = sadd.s32 0, 0
  %p69 = scmp.lt.s32.totalorder %s68, 0
  %s70 = scalar_select %p69, %s68, 0
  %p71 = scmp.eq.s32.totalorder 0, 0
  // Predicated region
  $region10: #{loss_function_forward.1} parent=0 // pred_check
    %p72 = pneg %p71
  $region11: #{loss_function_forward.1} parent=0 // pred_check_branch
    %74 = sbr.rel (%p72) target = $region13
  $region12: #{loss_function_forward.1} parent=0 // pred_region
    %75 = vst [vmem:[#allocation2] sm:$0xff] 0.0
    %76 = vst [vmem:[#allocation2 + $0x8] sm:$0xff] 0.0
  $region13: #{loss_function_forward.1} parent=0 // pred_fallthru
    _
  %v77 = vld [vmem:[%s56] sm:$0xff]
  %v78 = vld [vmem:[%s56 + $0x8] sm:$0xff]
  %v79 = vld [vmem:[%s67] sm:$0xff]
  %v80 = vld [vmem:[%s67 + $0x8] sm:$0xff]
  %v81 = vmax.f32 %v79, 1e-30
  %v82 = vmax.f32 %v80, 1e-30
  %v83 = vlog2.pop %v81
  %v84 = vmul.f32 %v83, 0.6931472
  %v85 = vlog2.pop %v82
  %v86 = vmul.f32 %v85, 0.6931472
  %v87 = vsub.f32 %v84, %v77
  %v88 = vsub.f32 %v86, %v78
  %v89 = vmul.f32 %v79, %v87
  %v90 = vmul.f32 %v80, %v88
  %v91 = vld [vmem:[#allocation2] sm:$0xff]
  %v92 = vld [vmem:[#allocation2 + $0x8] sm:$0xff]
  %v93 = vadd.f32 %v91, %v89
  %v94 = vadd.f32 %v92, %v90
  %95 = vst [vmem:[#allocation2] sm:$0xff] %v93
  %96 = vst [vmem:[#allocation2 + $0x8] sm:$0xff] %v94
  // Predicated region
  $region14: #{loss_function_forward.1} parent=0 // pred_check
    %p97 = pneg %p71
  $region15: #{loss_function_forward.1} parent=0 // pred_check_branch
    %99 = sbr.rel (%p97) target = $region17
  $region16: #{loss_function_forward.1} parent=0 // pred_region
    %v100 = vld [vmem:[#allocation2] sm:$0xff]
    %v101 = vld [vmem:[#allocation2 + $0x8] sm:$0xff]
    %104 = vst [vmem:[#allocation1] ss:$4 sm:$0xff] %v100
    %s105 = scalar_lea.vmem [#allocation1], 32
    %106 = vst [vmem:[%s105] ss:$4 sm:$0xff] %v101
    %v107 = vld.sshfl [vmem:[#allocation1] sm:$0xff pattern:$0x73625140]
    %v108 = vld.sshfl [vmem:[#allocation1 + $0x8] sm:$0xff pattern:$0x73625140]
    %v109 = vld.sshfl [vmem:[#allocation1 + $0x10] sm:$0xff pattern:$0x73625140]
    %v110 = vld.sshfl [vmem:[#allocation1 + $0x18] sm:$0xff pattern:$0x73625140]
    %v111 = vld.sshfl [vmem:[#allocation1 + $0x20] sm:$0xff pattern:$0x73625140]
    %v112 = vld.sshfl [vmem:[#allocation1 + $0x28] sm:$0xff pattern:$0x73625140]
    %v113 = vld.sshfl [vmem:[#allocation1 + $0x30] sm:$0xff pattern:$0x73625140]
    %v114 = vld.sshfl [vmem:[#allocation1 + $0x38] sm:$0xff pattern:$0x73625140]
    %vm123 = vcmask 1041408
    %v124 = vsel %vm123, %v107, 0.0
    %v125 = vsel %vm123, %v108, 0.0
    %v126 = vadd.f32 %v124, %v125
    %v127 = vsel %vm123, %v109, 0.0
    %v128 = vadd.f32 %v126, %v127
    %v129 = vsel %vm123, %v110, 0.0
    %v130 = vadd.f32 %v128, %v129
    %v131 = vsel %vm123, %v111, 0.0
    %v132 = vadd.f32 %v130, %v131
    %v133 = vsel %vm123, %v112, 0.0
    %v134 = vadd.f32 %v132, %v133
    %v135 = vsel %vm123, %v113, 0.0
    %v136 = vadd.f32 %v134, %v135
    %v137 = vsel %vm123, %v114, 0.0
    %v138 = vadd.f32 %v136, %v137
    %139 = vadd.xlane.f32.xlu0 %v138
    %v140 = vpop.xlane.xlu0 %139
    %v141 = vrot.slane %v140, 4
    %v142 = vadd.f32 %v140, %v141
    %v143 = vrot.slane %v142, 2
    %v144 = vadd.f32 %v142, %v143
    %v145 = vrot.slane %v144, 1
    %v146 = vadd.f32 %v144, %v145
    %s147 = vtos %v146
    %v148 = vstv %s147
    %149 = vst [vmem:[%s2] sm:$0xff] %v148
  $region17: #{loss_function_forward.1} parent=0 // pred_fallthru
    _
  // Predicated region
  $region18: #{loss_function_forward.1} parent=0 // pred_check
    _
  $region19: #{loss_function_forward.1} parent=0 // pred_check_branch
    %151 = sbr.rel (0) target = $region21
  $region20: #{loss_function_forward.1} parent=0 // pred_region
    _
  $region21: #{loss_function_forward.1} parent=0 // pred_fallthru
    _
  // Predicated region
  $region22: #{loss_function_forward.1} parent=0 // pred_check
    _
  $region23: #{loss_function_forward.1} parent=0 // pred_check_branch
    %153 = sbr.rel (0) target = $region25
  $region24: #{loss_function_forward.1} parent=0 // pred_region
    _
  $region25: #{loss_function_forward.1} parent=0 // pred_fallthru
    _

</llo_original>
